<compile_context>
chip_gen: v5e
topology: v5e:2x2
jax: 0.10.0
libtpu: 0.0.40
codegen_flags: <defaults>
</compile_context>

<pallas_src>
import functools

import jax
import jax.numpy as jnp
from jax import lax
from jax.experimental import pallas as pl
from jax.experimental.pallas import tpu as pltpu

_LANE = 128          # lane width: row-tile / output / MXU-N granularity
_SUBLANE_BF16 = 16   # bf16 sublane packing granularity


def _round_up(x, m):
    return (x + m - 1) // m * m


def _vmem_capacity_bytes():
    """Physical VMEM per TensorCore; conservative fallback if the query fails."""
    try:
        return int(pltpu.get_tpu_info().vmem_capacity_bytes)
    except Exception:
        return 64 << 20   # v7x has the smallest per-core VMEM (64 MiB)


# --------------------------------------------------------------------------- kernel

def _judge_kernel(x_ref, w1_ref, b1_ref, w2_ref, b2_ref, o_ref, xbf_ref, *, h2_chunk):
    """One (row_tile, h2_block) grid step.

    x_ref  : (TM, H)      activation tile (native dtype, f32 or bf16)
    w1_ref : (H2_BLK, H)  bf16, native PyTorch [out, in] layout
    b1_ref : (H2_BLK, 1)  f32
    w2_ref : (H2_BLK, 1)  f32 (second Linear weight as a column)
    b2_ref : (1, 1)       f32
    o_ref  : (1, 1, TM)   f32, lane-dense logit row, revisited/accumulated over j
    xbf_ref: (TM, H)      bf16 scratch; x is cast once per row tile (at j == 0)
    """
    j = pl.program_id(1)
    nj = pl.num_programs(1)

    @pl.when(j == 0)
    def _init():
        o_ref[...] = jnp.zeros_like(o_ref)
        xbf_ref[...] = x_ref[...].astype(xbf_ref.dtype)   # in-kernel per-tile cast

    x = xbf_ref[...]                                      # (TM, H) bf16
    tm = x.shape[0]
    n_chunks = w1_ref.shape[0] // h2_chunk

    # Chunk the H2 dimension so the (H2, TM) f32 intermediate never materializes:
    # each chunk does MXU dot -> +bias -> ReLU -> *w2 -> cross-sublane reduce.
    # TODO(synk): nn.Dropout is identity in eval mode; training-mode dropout
    # (prng_random_bits mask) is not implemented.
    def chunk(c, acc):
        off = pl.multiple_of(c * h2_chunk, h2_chunk)
        h = lax.dot_general(
            w1_ref[pl.ds(off, h2_chunk), :], x,
            dimension_numbers=(((1,), (1,)), ((), ())),
            preferred_element_type=jnp.float32)                      # (h2_chunk, TM)
        h = jnp.maximum(h + b1_ref[pl.ds(off, h2_chunk), :], 0.0)
        return acc + jnp.sum(h * w2_ref[pl.ds(off, h2_chunk), :],
                             axis=0, keepdims=True)                  # (1, TM)

    part = lax.fori_loop(0, n_chunks, chunk,
                         jnp.zeros((1, tm), jnp.float32), unroll=True)
    o_ref[...] += part[None, :, :]

    @pl.when(j == nj - 1)
    def _finalize():
        o_ref[...] = jax.nn.sigmoid(o_ref[...] + b2_ref[...])


# --------------------------------------------------------------------------- wrapper

def prepare_params(w1, b1, w2, b2):
    """One-time weight preparation (outside the per-call serving path): cast W1 to
    bf16, pad H2 to a DMA/MXU-friendly multiple (zero rows contribute exactly 0),
    and reshape biases / second-layer weight into f32 columns."""
    h2, _ = w1.shape
    h2_pad = _round_up(h2, 256) if h2 > 256 else _round_up(h2, _SUBLANE_BF16)
    pad = h2_pad - h2
    w1_bf = jnp.pad(w1.astype(jnp.bfloat16), ((0, pad), (0, 0)))
    b1_col = jnp.pad(jnp.asarray(b1, jnp.float32).reshape(h2, 1), ((0, pad), (0, 0)))
    w2_col = jnp.pad(jnp.asarray(w2, jnp.float32).reshape(h2, 1), ((0, pad), (0, 0)))
    b2_sc = jnp.asarray(b2, jnp.float32).reshape(1, 1)
    return w1_bf, b1_col, w2_col, b2_sc


def tool_call_judge_forward(hidden_states, w1_bf, b1_col, w2_col, b2_sc, *,
                            row_tile=256, max_resident_w1_bytes=None):
    """hidden_states: [B, S, H] or [B, H].  Weights from prepare_params().
    Returns probabilities [B, S] or [B] in float32."""
    if hidden_states.ndim == 3:
        B, S, H = hidden_states.shape
        x = hidden_states.reshape(B * S, H)
    elif hidden_states.ndim == 2:
        B, H = hidden_states.shape
        x = hidden_states
    else:
        raise ValueError("hidden_states must be rank 2 or 3")

    N = x.shape[0]
    H2p, Hw = w1_bf.shape
    if Hw != H:
        raise ValueError(f"hidden size mismatch: x has {H}, W1 has {Hw}")

    vmem_cap = _vmem_capacity_bytes()
    x_row_bytes = H * x.dtype.itemsize

    # Row tiling: multiples of 128 lanes (unmasked stores, full MXU columns),
    # >=2 tiles when N allows (both v7x TensorCores), and capped so the
    # double-buffered x tiles stay within ~25% of VMEM for very large H.
    tm = min(_round_up(row_tile, _LANE), _round_up(pl.cdiv(N, 2), _LANE))
    tm_mem_cap = max(_LANE, (int(0.25 * vmem_cap) // (2 * x_row_bytes)) // _LANE * _LANE)
    tm = max(_LANE, min(tm, tm_mem_cap))
    n_pad = _round_up(N, tm)
    if n_pad != N:   # tail pad only; no-op whenever N is already tile aligned
        x = jnp.pad(x, ((0, n_pad - N), (0, 0)))
    num_tiles = n_pad // tm

    # H2 blocking: keep W1 resident (single VMEM buffer) when it fits the chip's
    # budget, otherwise stream it over an inner "arbitrary" reduction axis.
    w1_bytes = H2p * H * 2
    budget = int(0.45 * vmem_cap) if max_resident_w1_bytes is None else max_resident_w1_bytes
    if w1_bytes <= budget or H2p <= 256 or H2p % 256 != 0:
        h2_blk = H2p
    else:
        h2_blk = 512 if (H2p % 512 == 0 and 4 * 512 * H <= vmem_cap // 2) else 256
    nj = H2p // h2_blk
    resident = nj == 1
    h2_chunk = min(256, h2_blk)
    if h2_blk % h2_chunk:
        h2_chunk = h2_blk

    def _invariant(shape, imap):
        # grid-invariant operand: single VMEM buffer instead of the default two
        return pl.BlockSpec(shape, imap, pipeline_mode=pl.Buffered(1))

    def _wspec(shape, imap):
        return _invariant(shape, imap) if resident else pl.BlockSpec(shape, imap)

    in_specs = [
        pl.BlockSpec((tm, H), lambda i, j: (i, 0)),        # x tile (streamed over rows)
        _wspec((h2_blk, H), lambda i, j: (j, 0)),          # W1 (resident or streamed)
        _wspec((h2_blk, 1), lambda i, j: (j, 0)),          # b1
        _wspec((h2_blk, 1), lambda i, j: (j, 0)),          # w2 column
        _invariant((1, 1), lambda i, j: (0, 0)),           # b2
    ]
    out_spec = pl.BlockSpec((1, 1, tm), lambda i, j: (i, 0, 0))   # lane-dense rows

    # VMEM budget: actual buffer set + headroom, clamped to physical capacity.
    need = ((1 if resident else 2) * h2_blk * H * 2        # W1 buffer(s), bf16
            + (1 if resident else 2) * 2 * h2_blk * 4      # b1 + w2 buffers
            + 2 * tm * x_row_bytes                         # double-buffered x tile
            + tm * H * 2                                   # bf16 x scratch
            + 2 * 2 * tm * 4                               # output block buffers
            + 2 * h2_chunk * tm * 4                        # chunk intermediate
            + (2 << 20))                                   # headroom
    vmem_limit = int(min(max(need, 16 << 20), vmem_cap - (4 << 20)))

    out = pl.pallas_call(
        functools.partial(_judge_kernel, h2_chunk=h2_chunk),
        out_shape=jax.ShapeDtypeStruct((num_tiles, 1, tm), jnp.float32),
        grid_spec=pltpu.PrefetchScalarGridSpec(
            num_scalar_prefetch=0,
            grid=(num_tiles, nj),
            in_specs=in_specs,
            out_specs=out_spec,
            scratch_shapes=[pltpu.VMEM((tm, H), jnp.bfloat16)],
        ),
        compiler_params=pltpu.CompilerParams(
            dimension_semantics=("parallel", "arbitrary"),
            vmem_limit_bytes=vmem_limit,
        ),
        cost_estimate=pl.CostEstimate(
            flops=2 * n_pad * H * H2p + 4 * n_pad * H2p,
            transcendentals=n_pad,
            bytes_accessed=(n_pad * x_row_bytes
                            + (1 if resident else num_tiles) * H2p * H * 2
                            + 2 * H2p * 4 + n_pad * 4),
        ),
    )(x, w1_bf, b1_col, w2_col, b2_sc)

    probs = out.reshape(n_pad)[:N]
    if hidden_states.ndim == 3:
        return probs.reshape(B, S)
    return probs


# --------------------------------------------------------------------------- init

def _xavier_uniform(key, fan_out, fan_in, dtype=jnp.float32):
    bound = (6.0 / (fan_in + fan_out)) ** 0.5
    return jax.random.uniform(key, (fan_out, fan_in), dtype=dtype,
                              minval=-bound, maxval=bound)


def init_params(hidden_size, key):
    """Mirrors ToolCallJudge._init_weights (num_layers=2)."""
    h2 = hidden_size // 2
    k1, k2 = jax.random.split(key)
    w1 = _xavier_uniform(k1, h2, hidden_size)             # Linear(H, H//2).weight
    b1 = jnp.zeros((h2,), jnp.float32)                    # zero bias (not last module)
    w2 = _xavier_uniform(k2, 1, h2)                       # Linear(H//2, 1).weight
    b2 = jnp.full((1,), -0.5, jnp.float32)                # last Linear bias = -0.5
    return w1, b1, w2, b2


def _reference(hs, w1, b1, w2, b2):
    x = hs.reshape(-1, hs.shape[-1]).astype(jnp.float32)
    h = jnp.maximum(x @ w1.T + b1, 0.0)
    return jax.nn.sigmoid(h @ w2.T + b2).reshape(hs.shape[:-1])


if __name__ == "__main__":
    key = jax.random.PRNGKey(0)
    k_x, k_p, k_x2, k_p2 = jax.random.split(key, 4)

    # ---- primary check: small shapes implied by the module ----
    B, S, H = 2, 8, 32
    hidden_states = jax.random.normal(k_x, (B, S, H), dtype=jnp.float32)
    w1, b1, w2, b2 = init_params(H, k_p)
    params = prepare_params(w1, b1, w2, b2)

    fwd = jax.jit(tool_call_judge_forward)
    probs = fwd(hidden_states, *params)
    jax.block_until_ready(probs)
    assert probs.shape == (B, S), probs.shape

    ref = _reference(hidden_states, w1, b1, w2, b2)
    err = float(jnp.max(jnp.abs(probs - ref)))
    assert err < 2e-2, err

    # 2-D input path ([B, H] -> [B])
    probs_2d = fwd(hidden_states[:, 0, :], *params)
    jax.block_until_ready(probs_2d)
    assert probs_2d.shape == (B,), probs_2d.shape
    err_2d = float(jnp.max(jnp.abs(probs_2d - ref[:, 0])))
    assert err_2d < 2e-2, err_2d

    # ---- exercise the streamed-W1 / multi-h2-block reduction path (forced) ----
    B2, S2, H2BIG = 3, 64, 2048
    hs2 = jax.random.normal(k_x2, (B2, S2, H2BIG), dtype=jnp.float32)
    w1b, b1b, w2b, b2b = init_params(H2BIG, k_p2)
    params2 = prepare_params(w1b, b1b, w2b, b2b)
    probs2 = tool_call_judge_forward(hs2, *params2, max_resident_w1_bytes=0)
    jax.block_until_ready(probs2)
    assert probs2.shape == (B2, S2), probs2.shape
    ref2 = _reference(hs2, w1b, b1b, w2b, b2b)
    err2 = float(jnp.max(jnp.abs(probs2 - ref2)))
    assert err2 < 2e-2, err2

    print("KERNEL_OK")
</pallas_src>

<mosaic_0001>
module attributes {stable_mosaic.version = 11 : i64} {
  func.func @_judge_kernel(%arg0: i32, %arg1: i32, %arg2: memref<128x32xf32, #tpu.memory_space<vmem>>, %arg3: memref<16x32xbf16, #tpu.memory_space<vmem>>, %arg4: memref<16x1xf32, #tpu.memory_space<vmem>>, %arg5: memref<16x1xf32, #tpu.memory_space<vmem>>, %arg6: memref<1x1xf32, #tpu.memory_space<vmem>>, %arg7: memref<1x1x128xf32, #tpu.memory_space<vmem>>, %arg8: memref<128x32xbf16, #tpu.memory_space<vmem>>) attributes {dimension_semantics = [#tpu.dimension_semantics<parallel>, #tpu.dimension_semantics<arbitrary>], iteration_bounds = array<i64: 1, 1>, scalar_prefetch = 0 : i64, scratch_operands = 1 : i64, tpu.core_type = #tpu.core_type<tc>, window_params = [{transform_indices = @transform_0, window_bounds = array<i64: 128, 32>}, {pipeline_mode = #tpu.pipeline_mode<synchronous>, transform_indices = @transform_1, window_bounds = array<i64: 16, 32>}, {pipeline_mode = #tpu.pipeline_mode<synchronous>, transform_indices = @transform_2, window_bounds = array<i64: 16, 1>}, {pipeline_mode = #tpu.pipeline_mode<synchronous>, transform_indices = @transform_3, window_bounds = array<i64: 16, 1>}, {pipeline_mode = #tpu.pipeline_mode<synchronous>, transform_indices = @transform_4, window_bounds = array<i64: 1, 1>}, {transform_indices = @transform_5, window_bounds = array<i64: 1, 1, 128>}]} {
    %c0_i32 = arith.constant 0 : i32
    %0 = arith.cmpi eq, %arg1, %c0_i32 : i32
    %1 = arith.extui %0 : i1 to i32
    %c0_i32_0 = arith.constant 0 : i32
    %2 = arith.cmpi ne, %1, %c0_i32_0 : i32
    scf.if %2 {
      %cst_17 = arith.constant 0.000000e+00 : f32
      %30 = vector.broadcast %cst_17 : f32 to vector<1x1x128xf32>
      %c0_18 = arith.constant 0 : index
      %c0_19 = arith.constant 0 : index
      %c0_20 = arith.constant 0 : index
      %31 = vector.load %arg7[%c0_18, %c0_19, %c0_20] : memref<1x1x128xf32, #tpu.memory_space<vmem>>, vector<1x1x128xf32>
      tpu.vector_store %arg7[%c0_18, %c0_19, %c0_20], %30 {strides = array<i32>} : memref<1x1x128xf32, #tpu.memory_space<vmem>>, vector<1x1x128xf32>,
      %c0_21 = arith.constant 0 : index
      %c0_22 = arith.constant 0 : index
      %32 = vector.load %arg2[%c0_21, %c0_22] : memref<128x32xf32, #tpu.memory_space<vmem>>, vector<128x32xf32>
      %33 = arith.truncf %32 : vector<128x32xf32> to vector<128x32xbf16>
      %c0_23 = arith.constant 0 : index
      %c0_24 = arith.constant 0 : index
      %34 = vector.load %arg8[%c0_23, %c0_24] : memref<128x32xbf16, #tpu.memory_space<vmem>>, vector<128x32xbf16>
      tpu.vector_store %arg8[%c0_23, %c0_24], %33 {strides = array<i32>} : memref<128x32xbf16, #tpu.memory_space<vmem>>, vector<128x32xbf16>,
    } else {
    }
    %c0 = arith.constant 0 : index
    %c0_1 = arith.constant 0 : index
    %3 = vector.load %arg8[%c0, %c0_1] : memref<128x32xbf16, #tpu.memory_space<vmem>>, vector<128x32xbf16>
    %cst = arith.constant 0.000000e+00 : f32
    %4 = vector.broadcast %cst : f32 to vector<1x128xf32>
    %c0_i32_2 = arith.constant 0 : i32
    %c16_i32 = arith.constant 16 : i32
    %5 = arith.muli %c0_i32_2, %c16_i32 : i32
    %6 = tpu.assume_multiple %5, 16 : i32
    %7 = arith.index_cast %6 : i32 to index
    %c0_3 = arith.constant 0 : index
    %8 = vector.load %arg3[%7, %c0_3] : memref<16x32xbf16, #tpu.memory_space<vmem>>, vector<16x32xbf16>
    %cst_4 = arith.constant dense<0.000000e+00> : vector<16x128xf32>
    %9 = tpu.matmul %8, %3, %cst_4 {dimension_numbers = #tpu.dot_dimension_numbers<[1], [1], [0], [0], [0, 0, 1, 0], [], []>} : vector<16x32xbf16>, vector<128x32xbf16>, vector<16x128xf32> -> vector<16x128xf32>
    %10 = arith.index_cast %6 : i32 to index
    %c0_5 = arith.constant 0 : index
    %11 = vector.load %arg4[%10, %c0_5] : memref<16x1xf32, #tpu.memory_space<vmem>>, vector<16x1xf32>
    %12 = vector.broadcast %11 : vector<16x1xf32> to vector<16x128xf32>
    %13 = arith.addf %9, %12 : vector<16x128xf32>
    %cst_6 = arith.constant 0.000000e+00 : f32
    %14 = vector.broadcast %cst_6 : f32 to vector<16x128xf32>
    %15 = arith.maximumf %13, %14 : vector<16x128xf32>
    %16 = arith.index_cast %6 : i32 to index
    %c0_7 = arith.constant 0 : index
    %17 = vector.load %arg5[%16, %c0_7] : memref<16x1xf32, #tpu.memory_space<vmem>>, vector<16x1xf32>
    %18 = vector.broadcast %17 : vector<16x1xf32> to vector<16x128xf32>
    %19 = arith.mulf %15, %18 : vector<16x128xf32>
    %cst_8 = arith.constant dense<0.000000e+00> : vector<128xf32>
    %20 = vector.multi_reduction <add>, %19, %cst_8 [0] : vector<16x128xf32> to vector<128xf32>
    %21 = vector.shape_cast %20 : vector<128xf32> to vector<1x128xf32>
    %22 = arith.addf %4, %21 : vector<1x128xf32>
    %c1_i32 = arith.constant 1 : i32
    %c0_9 = arith.constant 0 : index
    %c0_10 = arith.constant 0 : index
    %c0_11 = arith.constant 0 : index
    %23 = vector.load %arg7[%c0_9, %c0_10, %c0_11] : memref<1x1x128xf32, #tpu.memory_space<vmem>>, vector<1x1x128xf32>
    %24 = vector.shape_cast %22 : vector<1x128xf32> to vector<1x1x128xf32>
    %25 = arith.addf %23, %24 : vector<1x1x128xf32>
    %c0_12 = arith.constant 0 : index
    %c0_13 = arith.constant 0 : index
    %c0_14 = arith.constant 0 : index
    %26 = vector.load %arg7[%c0_12, %c0_13, %c0_14] : memref<1x1x128xf32, #tpu.memory_space<vmem>>, vector<1x1x128xf32>
    tpu.vector_store %arg7[%c0_12, %c0_13, %c0_14], %25 {strides = array<i32>} : memref<1x1x128xf32, #tpu.memory_space<vmem>>, vector<1x1x128xf32>,
    %c0_i32_15 = arith.constant 0 : i32
    %27 = arith.cmpi eq, %arg1, %c0_i32_15 : i32
    %28 = arith.extui %27 : i1 to i32
    %c0_i32_16 = arith.constant 0 : i32
    %29 = arith.cmpi ne, %28, %c0_i32_16 : i32
    scf.if %29 {
      %c0_17 = arith.constant 0 : index
      %c0_18 = arith.constant 0 : index
      %c0_19 = arith.constant 0 : index
      %30 = vector.load %arg7[%c0_17, %c0_18, %c0_19] : memref<1x1x128xf32, #tpu.memory_space<vmem>>, vector<1x1x128xf32>
      %c0_20 = arith.constant 0 : index
      %c0_21 = arith.constant 0 : index
      %31 = vector.load %arg6[%c0_20, %c0_21] : memref<1x1xf32, #tpu.memory_space<vmem>>, vector<1x1xf32>
      %32 = vector.shape_cast %31 : vector<1x1xf32> to vector<1x1x1xf32>
      %33 = vector.broadcast %32 : vector<1x1x1xf32> to vector<1x1x128xf32>
      %34 = arith.addf %30, %33 : vector<1x1x128xf32>
      %35 = arith.negf %34 : vector<1x1x128xf32>
      %36 = math.exp %35 : vector<1x1x128xf32>
      %cst_22 = arith.constant 1.000000e+00 : f32
      %37 = vector.broadcast %cst_22 : f32 to vector<1x1x128xf32>
      %38 = arith.addf %37, %36 : vector<1x1x128xf32>
      %39 = arith.divf %37, %38 : vector<1x1x128xf32>
      %c0_23 = arith.constant 0 : index
      %c0_24 = arith.constant 0 : index
      %c0_25 = arith.constant 0 : index
      %40 = vector.load %arg7[%c0_23, %c0_24, %c0_25] : memref<1x1x128xf32, #tpu.memory_space<vmem>>, vector<1x1x128xf32>
      tpu.vector_store %arg7[%c0_23, %c0_24, %c0_25], %39 {strides = array<i32>} : memref<1x1x128xf32, #tpu.memory_space<vmem>>, vector<1x1x128xf32>,
    } else {
    }
    return
  }
  func.func @transform_0(%arg0: i32, %arg1: i32) -> (i32, i32) {
    %c0_i32 = arith.constant 0 : i32
    %c0_i32_0 = arith.constant 0 : i32
    return %arg0, %c0_i32 : i32, i32
  }
  func.func @transform_1(%arg0: i32, %arg1: i32) -> (i32, i32) {
    %c0_i32 = arith.constant 0 : i32
    %c0_i32_0 = arith.constant 0 : i32
    return %arg1, %c0_i32 : i32, i32
  }
  func.func @transform_2(%arg0: i32, %arg1: i32) -> (i32, i32) {
    %c0_i32 = arith.constant 0 : i32
    %c0_i32_0 = arith.constant 0 : i32
    return %arg1, %c0_i32 : i32, i32
  }
  func.func @transform_3(%arg0: i32, %arg1: i32) -> (i32, i32) {
    %c0_i32 = arith.constant 0 : i32
    %c0_i32_0 = arith.constant 0 : i32
    return %arg1, %c0_i32 : i32, i32
  }
  func.func @transform_4(%arg0: i32, %arg1: i32) -> (i32, i32) {
    %c0_i32 = arith.constant 0 : i32
    %c0_i32_0 = arith.constant 0 : i32
    %c0_i32_1 = arith.constant 0 : i32
    return %c0_i32, %c0_i32_0 : i32, i32
  }
  func.func @transform_5(%arg0: i32, %arg1: i32) -> (i32, i32, i32) {
    %c0_i32 = arith.constant 0 : i32
    %c0_i32_0 = arith.constant 0 : i32
    %c0_i32_1 = arith.constant 0 : i32
    return %arg0, %c0_i32, %c0_i32_0 : i32, i32, i32
  }
}

</mosaic_0001>

<llo_original>
// kernel: tool_call_judge_forward.1
$region0: #{tool_call_judge_forward.1}
  #allocation0 [shape = 'u32[]', space=smem, size = 0x4, offset = 0x4, fixed_abs, tag = 'smem constant byte address 0x4 - core index']
  #allocation1 [shape = 'u32[72,128]{1,0:T(1,128)}', space=vmem, size = 0x9000, scoped, tag = 'internal scratch']
  #allocation2 [shape = 'bf16[128,32]{1,0:T(8,128)(2,1)}', space=vmem, size = 0x8000, scoped, tag = 'scratch operand']
  #allocation3 [shape = 'f32[1,1]{1,0:T(1,128)S(1)}', space=vmem, size = 0x200, scoped, tag = 'scoped memory for tool_call_judge_forward.1']
  %s0 = inlined_call_operand.vmem [shape: f32[128,32], index: 0, kind: input, shape index: {}]
  %s1 = inlined_call_operand.vmem [shape: bf16[16,32], index: 1, kind: input, shape index: {}]
  %s2 = inlined_call_operand.vmem [shape: f32[16,1], index: 2, kind: input, shape index: {}]
  %s3 = inlined_call_operand.vmem [shape: f32[16,1], index: 3, kind: input, shape index: {}]
  %s4 = inlined_call_operand.<no memory space> [shape: f32[1,1], index: 4, kind: input, shape index: {}]
  %s5 = inlined_call_operand.vmem [shape: f32[1,1,128], index: 5, kind: output, shape index: {}]
  %s6 = sld [smem:[#allocation0]]
  $region38: #{tool_call_judge_forward.1} parent=0
    _
  %s8 = ssub.s32 1, %s6
  %s9 = scalar_select 0, %s8, %s6
  %v10 = vstv %s4
  %11 = vst [vmem:[#allocation3] sm:$0x1] %v10
  // Predicated region
  $region2: #{tool_call_judge_forward.1} parent=0 // pred_check
    _
  $region3: #{tool_call_judge_forward.1} parent=0 // pred_check_branch
    %13 = sbr.rel (0) target = $region5
  $region4: #{tool_call_judge_forward.1} parent=0 // pred_region
    _
  $region5: #{tool_call_judge_forward.1} parent=0 // pred_fallthru
    _
  // Predicated region
  $region6: #{tool_call_judge_forward.1} parent=0 // pred_check
    _
  $region7: #{tool_call_judge_forward.1} parent=0 // pred_check_branch
    %15 = sbr.rel (0) target = $region9
  $region8: #{tool_call_judge_forward.1} parent=0 // pred_region
    _
  $region9: #{tool_call_judge_forward.1} parent=0 // pred_fallthru
    _
  // Predicated region
  $region10: #{tool_call_judge_forward.1} parent=0 // pred_check
    _
  $region11: #{tool_call_judge_forward.1} parent=0 // pred_check_branch
    %17 = sbr.rel (0) target = $region13
  $region12: #{tool_call_judge_forward.1} parent=0 // pred_region
    _
  $region13: #{tool_call_judge_forward.1} parent=0 // pred_fallthru
    _
  // Predicated region
  $region14: #{tool_call_judge_forward.1} parent=0 // pred_check
    _
  $region15: #{tool_call_judge_forward.1} parent=0 // pred_check_branch
    %19 = sbr.rel (0) target = $region17
  $region16: #{tool_call_judge_forward.1} parent=0 // pred_region
    _
  $region17: #{tool_call_judge_forward.1} parent=0 // pred_fallthru
    _
  // Predicated region
  $region18: #{tool_call_judge_forward.1} parent=0 // pred_check
    _
  $region19: #{tool_call_judge_forward.1} parent=0 // pred_check_branch
    %21 = sbr.rel (0) target = $region21
  $region20: #{tool_call_judge_forward.1} parent=0 // pred_region
    _
  $region21: #{tool_call_judge_forward.1} parent=0 // pred_fallthru
    _
  %p22 = scmp.eq.s32.totalorder 0, 0
  // Predicated region
  $region22: #{tool_call_judge_forward.1} parent=0 // pred_check
    %p23 = pneg %p22
  $region23: #{tool_call_judge_forward.1} parent=0 // pred_check_branch
    %25 = sbr.rel (%p23) target = $region25
  $region24: #{tool_call_judge_forward.1} parent=0 // pred_region
    %26 = vst [vmem:[%s5] sm:$0x1] 0.0
    %v27 = vld [vmem:[%s0] sm:$0xff]
    %v28 = vld [vmem:[%s0 + $0x8] sm:$0xff]
    %v29 = vld [vmem:[%s0 + $0x10] sm:$0xff]
    %v30 = vld [vmem:[%s0 + $0x18] sm:$0xff]
    %v31 = vld [vmem:[%s0 + $0x20] sm:$0xff]
    %v32 = vld [vmem:[%s0 + $0x28] sm:$0xff]
    %v33 = vld [vmem:[%s0 + $0x30] sm:$0xff]
    %v34 = vld [vmem:[%s0 + $0x38] sm:$0xff]
    %v35 = vld [vmem:[%s0 + $0x40] sm:$0xff]
    %v36 = vld [vmem:[%s0 + $0x48] sm:$0xff]
    %v37 = vld [vmem:[%s0 + $0x50] sm:$0xff]
    %v38 = vld [vmem:[%s0 + $0x58] sm:$0xff]
    %v39 = vld [vmem:[%s0 + $0x60] sm:$0xff]
    %v40 = vld [vmem:[%s0 + $0x68] sm:$0xff]
    %v41 = vld [vmem:[%s0 + $0x70] sm:$0xff]
    %v42 = vld [vmem:[%s0 + $0x78] sm:$0xff]
    %v43 = vpack.c.bf16 %v27, %v27
    %v44 = vpack.c.bf16 %v28, %v28
    %v45 = vpack.c.bf16 %v29, %v29
    %v46 = vpack.c.bf16 %v30, %v30
    %v47 = vpack.c.bf16 %v31, %v31
    %v48 = vpack.c.bf16 %v32, %v32
    %v49 = vpack.c.bf16 %v33, %v33
    %v50 = vpack.c.bf16 %v34, %v34
    %v51 = vpack.c.bf16 %v35, %v35
    %v52 = vpack.c.bf16 %v36, %v36
    %v53 = vpack.c.bf16 %v37, %v37
    %v54 = vpack.c.bf16 %v38, %v38
    %v55 = vpack.c.bf16 %v39, %v39
    %v56 = vpack.c.bf16 %v40, %v40
    %v57 = vpack.c.bf16 %v41, %v41
    %v58 = vpack.c.bf16 %v42, %v42
    %vm59 = vcmask 257024
    %60 = vst.msk [vmem:[#allocation2] sm:$0xf] %vm59, %v43
    %61 = vst.msk [vmem:[#allocation2 + $0x4] sm:$0xf] %vm59, %v44
    %62 = vst.msk [vmem:[#allocation2 + $0x8] sm:$0xf] %vm59, %v45
    %63 = vst.msk [vmem:[#allocation2 + $0xc] sm:$0xf] %vm59, %v46
    %64 = vst.msk [vmem:[#allocation2 + $0x10] sm:$0xf] %vm59, %v47
    %65 = vst.msk [vmem:[#allocation2 + $0x14] sm:$0xf] %vm59, %v48
    %66 = vst.msk [vmem:[#allocation2 + $0x18] sm:$0xf] %vm59, %v49
    %67 = vst.msk [vmem:[#allocation2 + $0x1c] sm:$0xf] %vm59, %v50
    %68 = vst.msk [vmem:[#allocation2 + $0x20] sm:$0xf] %vm59, %v51
    %69 = vst.msk [vmem:[#allocation2 + $0x24] sm:$0xf] %vm59, %v52
    %70 = vst.msk [vmem:[#allocation2 + $0x28] sm:$0xf] %vm59, %v53
    %71 = vst.msk [vmem:[#allocation2 + $0x2c] sm:$0xf] %vm59, %v54
    %72 = vst.msk [vmem:[#allocation2 + $0x30] sm:$0xf] %vm59, %v55
    %73 = vst.msk [vmem:[#allocation2 + $0x34] sm:$0xf] %vm59, %v56
    %74 = vst.msk [vmem:[#allocation2 + $0x38] sm:$0xf] %vm59, %v57
    %75 = vst.msk [vmem:[#allocation2 + $0x3c] sm:$0xf] %vm59, %v58
  $region25: #{tool_call_judge_forward.1} parent=0 // pred_fallthru
    _
  %v76 = vld [vmem:[#allocation2] sm:$0xf]
  %v77 = vld [vmem:[#allocation2 + $0x4] sm:$0xf]
  %v78 = vld [vmem:[#allocation2 + $0x8] sm:$0xf]
  %v79 = vld [vmem:[#allocation2 + $0xc] sm:$0xf]
  %v80 = vld [vmem:[#allocation2 + $0x10] sm:$0xf]
  %v81 = vld [vmem:[#allocation2 + $0x14] sm:$0xf]
  %v82 = vld [vmem:[#allocation2 + $0x18] sm:$0xf]
  %v83 = vld [vmem:[#allocation2 + $0x1c] sm:$0xf]
  %v84 = vld [vmem:[#allocation2 + $0x20] sm:$0xf]
  %v85 = vld [vmem:[#allocation2 + $0x24] sm:$0xf]
  %v86 = vld [vmem:[#allocation2 + $0x28] sm:$0xf]
  %v87 = vld [vmem:[#allocation2 + $0x2c] sm:$0xf]
  %v88 = vld [vmem:[#allocation2 + $0x30] sm:$0xf]
  %v89 = vld [vmem:[#allocation2 + $0x34] sm:$0xf]
  %v90 = vld [vmem:[#allocation2 + $0x38] sm:$0xf]
  %v91 = vld [vmem:[#allocation2 + $0x3c] sm:$0xf]
  %v92 = vld [vmem:[%s1] sm:$0xf]
  %v93 = vld [vmem:[%s1 + $0x4] sm:$0xf]
  %v94 = vld [vmem:[%s2] sm:$0xff]
  %v95 = vld [vmem:[%s2 + $0x8] sm:$0xff]
  %97 = vset.pattern.permute.xlu0 0
  %98 = vperm.xlu0 %97, %v94
  %v99 = vpop.permute.xlu0 %98
  %102 = vset.pattern.permute.xlu0 0
  %103 = vperm.xlu0 %102, %v95
  %v104 = vpop.permute.xlu0 %103
  %v108 = vunpack.c.l.b16 %v92
  %v109 = vunpack.c.l.b16 %v93
  %v110 = vpack.c.b16 %v109, %v108
  %v127 = vunpack.c.l.b16 %v76
  %v128 = vunpack.c.l.b16 %v77
  %v129 = vunpack.c.l.b16 %v78
  %v130 = vunpack.c.l.b16 %v79
  %v131 = vunpack.c.l.b16 %v80
  %v132 = vunpack.c.l.b16 %v81
  %v133 = vunpack.c.l.b16 %v82
  %v134 = vunpack.c.l.b16 %v83
  %v135 = vunpack.c.l.b16 %v84
  %v136 = vunpack.c.l.b16 %v85
  %v137 = vunpack.c.l.b16 %v86
  %v138 = vunpack.c.l.b16 %v87
  %v139 = vunpack.c.l.b16 %v88
  %v140 = vunpack.c.l.b16 %v89
  %v141 = vunpack.c.l.b16 %v90
  %v142 = vunpack.c.l.b16 %v91
  %v143 = vpack.c.b16 %v128, %v127
  %v144 = vpack.c.b16 %v130, %v129
  %v145 = vpack.c.b16 %v132, %v131
  %v146 = vpack.c.b16 %v134, %v133
  %v147 = vpack.c.b16 %v136, %v135
  %v148 = vpack.c.b16 %v138, %v137
  %v149 = vpack.c.b16 %v140, %v139
  %v150 = vpack.c.b16 %v142, %v141
  %vm151 = vcmask 261120
  %v153 = vsel %vm151, %v110, 0
  %v156 = vsel %vm151, %v143, 0
  %v159 = vsel %vm151, %v144, 0
  %v162 = vsel %vm151, %v145, 0
  %v165 = vsel %vm151, %v146, 0
  %v168 = vsel %vm151, %v147, 0
  %v171 = vsel %vm151, %v148, 0
  %v174 = vsel %vm151, %v149, 0
  %v177 = vsel %vm151, %v150, 0
  %179 = vmatpush.bf16.xpose.msra.mxu0 %v177
  %180 = vmatpush.bf16.xpose.msra.mxu0 %v174
  %181 = vmatpush.bf16.xpose.msra.mxu0 %v171
  %182 = vmatpush.bf16.xpose.msra.mxu0 %v168
  %183 = vmatpush.bf16.xpose.msra.mxu0 %v165
  %184 = vmatpush.bf16.xpose.msra.mxu0 %v162
  %185 = vmatpush.bf16.xpose.msra.mxu0 %v159
  %186 = vmatpush.bf16.xpose.msra.mxu0 %v156
  %187 = vmatmul.bf16.gmra.mxu0 %v153
  %v188 = vpop.f32.mrf.mxu0
  %v189 = vadd.f32 %v99, %v188
  %v190 = vpop.f32.mrf.mxu0
  %v191 = vadd.f32 %v104, %v190
  %192 = vdwg.mxu0
  %v193 = vmax.f32 %v189, 0.0
  %v194 = vmax.f32 %v191, 0.0
  %v195 = vld [vmem:[%s3] sm:$0xff]
  %v196 = vld [vmem:[%s3 + $0x8] sm:$0xff]
  %198 = vset.pattern.permute.xlu0 0
  %199 = vperm.xlu0 %198, %v195
  %v200 = vpop.permute.xlu0 %199
  %203 = vset.pattern.permute.xlu0 0
  %204 = vperm.xlu0 %203, %v196
  %v205 = vpop.permute.xlu0 %204
  %v207 = vmul.f32 %v193, %v200
  %v208 = vmul.f32 %v194, %v205
  %v209 = vadd.f32 %v207, %v208
  %v210 = vrot.slane %v209, 4
  %v211 = vadd.f32 %v209, %v210
  %v212 = vrot.slane %v211, 2
  %v213 = vadd.f32 %v211, %v212
  %v214 = vrot.slane %v213, 1
  %v215 = vadd.f32 %v213, %v214
  %v216 = vadd.f32 %v215, 0.0
  %v217 = vld [vmem:[%s5] sm:$0x1]
  %v218 = vadd.f32 %v217, %v216
  %219 = vst [vmem:[%s5] sm:$0x1] %v218
  // Predicated region
  $region26: #{tool_call_judge_forward.1} parent=0 // pred_check
    %p220 = pneg %p22
  $region27: #{tool_call_judge_forward.1} parent=0 // pred_check_branch
    %222 = sbr.rel (%p220) target = $region29
  $region28: #{tool_call_judge_forward.1} parent=0 // pred_region
    %v223 = vld [vmem:[%s5] sm:$0x1]
    %v224 = vld [vmem:[#allocation3] sm:$0x1]
    %226 = vset.pattern.permute.xlu0 0
    %227 = vperm.xlu0 %226, %v224
    %v228 = vpop.permute.xlu0 %227
    %v230 = vperm.slane %v228, 0
    %v231 = vadd.f32 %v223, %v230
    %v232 = vxor.u32 %v231, 2147483648
    %v233 = vmul.f32 %v232, 1.442695
    %v234 = vpow.pop %v233
    %v235 = vadd.f32 %v234, 1.0
    %v236 = vrcp.pop %v235
    %v237 = vmul.f32 %v235, %v236
    %v238 = vsub.f32 1.0, %v237
    %v239 = vmul.f32 %v236, %v238
    %v240 = vadd.f32 %v236, %v239
    %vm241 = vweird.f32 %v235
    %vm242 = vweird.f32 %v236
    %vm243 = vmor %vm241, %vm242
    %v244 = vsel %vm243, %v236, %v240
    %v245 = vand.u32 2147483647, %v235
    %vm246 = vcmp.eq.f32.partialorder %v245, 8.507059e+37
    %v247 = vand.u32 %v235, 2147483648
    %v248 = vor.u32 1.1754944e-38, %v247
    %v249 = vsel %vm246, %v248, %v244
    %v250 = vmul.f32 1.0, %v249
    %251 = vst [vmem:[%s5] sm:$0x1] %v250
  $region29: #{tool_call_judge_forward.1} parent=0 // pred_fallthru
    _
  // Predicated region
  $region30: #{tool_call_judge_forward.1} parent=0 // pred_check
    _
  $region31: #{tool_call_judge_forward.1} parent=0 // pred_check_branch
    %253 = sbr.rel (0) target = $region33
  $region32: #{tool_call_judge_forward.1} parent=0 // pred_region
    _
  $region33: #{tool_call_judge_forward.1} parent=0 // pred_fallthru
    _
  // Predicated region
  $region34: #{tool_call_judge_forward.1} parent=0 // pred_check
    _
  $region35: #{tool_call_judge_forward.1} parent=0 // pred_check_branch
    %255 = sbr.rel (0) target = $region37
  $region36: #{tool_call_judge_forward.1} parent=0 // pred_region
    _
  $region37: #{tool_call_judge_forward.1} parent=0 // pred_fallthru
    _

</llo_original>
